<compile_context>
chip_gen: v7x
topology: tpu7x:2x2x1
jax: 0.10.0
libtpu: 0.0.40
codegen_flags: <defaults>
</compile_context>

<pallas_src>
import numpy as np
import jax
import jax.numpy as jnp
from jax import lax
from jax.experimental import pallas as pl
from jax.experimental.pallas import tpu as pltpu


def bottleneck_kernel(x_ref, w1_ref, w2_ref, w3_ref, b1_ref, b2_ref, b3_ref, o_ref):
    # x_ref block: (Nb, H, W*Cin) bf16 (lane-dense); o_ref block: (Nb, Ho, W*C4) f32.
    Nb, H, _ = x_ref.shape
    Ho = H - 2

    for n in range(Nb):                               # static unroll over samples in block
        x_s = x_ref[n]                                # (H, W*Cin) bf16, straight to MXU

        # ---- conv1 (1x1, BN1 folded into block-diagonal w1) + bias + relu ----
        h1 = jnp.dot(x_s, w1_ref[...], preferred_element_type=jnp.float32)   # (H, W*P)
        h1 = jnp.maximum(h1 + b1_ref[...], 0.0).astype(jnp.bfloat16)

        # ---- conv2 (3x3, padding=0, stride=1), BN2 folded ----
        # Column taps are baked into the banded w2[kh]; the row taps are three full-height
        # matmuls combined with static row-offset slices (no scratch, no unaligned loads).
        c0 = jnp.dot(h1, w2_ref[0], preferred_element_type=jnp.float32)      # (H, W*P)
        c1 = jnp.dot(h1, w2_ref[1], preferred_element_type=jnp.float32)
        c2 = jnp.dot(h1, w2_ref[2], preferred_element_type=jnp.float32)
        acc = c0[0:Ho, :] + c1[1:1 + Ho, :] + c2[2:2 + Ho, :]                # (Ho, W*P)
        h2 = jnp.maximum(acc + b2_ref[...], 0.0).astype(jnp.bfloat16)

        # ---- conv3 (1x1, BN3 folded; +1 output-column shift baked into w3) + bias ----
        h3 = jnp.dot(h2, w3_ref[...], preferred_element_type=jnp.float32) + b3_ref[...]

        # ---- cropped residual + relu ----
        # Because w3 places output column j at lanes [(j+1)*C4, (j+2)*C4), the residual is
        # just rows [1, 1+Ho) of x with NO lane shift; junk lanes are cropped in the wrapper.
        res = x_s.astype(jnp.float32)[1:1 + Ho, :]                           # (Ho, W*C4)
        o_ref[n] = jnp.maximum(h3 + res, 0.0).astype(o_ref.dtype)            # dense 256-lane store


def _fold_params(params):
    """Fold BN scales into conv weights (fp32 math), cast folded weights to bf16.
    Used by the plain-JAX reference."""
    w1, w2, w3, s1, b1, s2, b2, s3, b3 = params
    w1f = (w1 * s1).astype(jnp.bfloat16)                    # (Cin, P)
    w2f = (w2 * s2.reshape(1, 1, -1)).astype(jnp.bfloat16)  # (9, P, P), out-channel scaled
    w3f = (w3 * s3).astype(jnp.bfloat16)                    # (P, C4)
    return w1f, w2f, w3f, b1, b2, b3


def _fold_and_densify(params, W):
    """Fold BN into the convs and build the lane-dense (block-diag / banded) weights the
    kernel consumes. Built once on host with numpy; zeros are exact in bf16, so per-entry
    values match the reference's folded bf16 weights."""
    w1, w2, w3, s1, b1, s2, b2, s3, b3 = (np.asarray(p, np.float32) for p in params)
    Cin, P = w1.shape
    C4 = w3.shape[1]
    Wo = W - 2

    w1f = w1 * s1                                   # (Cin, P)
    w2f = w2 * s2.reshape(1, 1, -1)                 # (9, P, P)
    w3f = w3 * s3                                   # (P, C4)

    # conv1: block-diagonal (W*Cin, W*P) — one 1x1 conv per spatial column.
    w1d = np.zeros((W * Cin, W * P), np.float32)
    for q in range(W):
        w1d[q * Cin:(q + 1) * Cin, q * P:(q + 1) * P] = w1f

    # conv2: one banded (W*P, W*P) matrix per row tap kh; column taps kw are the bands.
    # Only valid output columns j < Wo get weights (junk columns are cropped anyway).
    w2d = np.zeros((3, W * P, W * P), np.float32)
    for kh in range(3):
        for kw in range(3):
            for j in range(Wo):
                w2d[kh, (j + kw) * P:(j + kw + 1) * P, j * P:(j + 1) * P] = w2f[kh * 3 + kw]

    # conv3: block-diagonal (W*P, W*C4) with the residual's +1 column shift baked in:
    # output column j lands at lanes [(j+1)*C4, (j+2)*C4).
    w3d = np.zeros((W * P, W * C4), np.float32)
    for j in range(Wo):
        w3d[j * P:(j + 1) * P, (j + 1) * C4:(j + 2) * C4] = w3f

    b1d = np.tile(np.asarray(b1, np.float32), (1, W))   # (1, W*P)
    b2d = np.tile(np.asarray(b2, np.float32), (1, W))   # (1, W*P)
    b3d = np.tile(np.asarray(b3, np.float32), (1, W))   # (1, W*C4)

    return (jnp.asarray(w1d, jnp.bfloat16), jnp.asarray(w2d, jnp.bfloat16),
            jnp.asarray(w3d, jnp.bfloat16), jnp.asarray(b1d), jnp.asarray(b2d),
            jnp.asarray(b3d))


def bottleneck_nop_pallas(x_nchw, params, samples_per_step=1):
    """x_nchw: (N, Cin, H, W) float32. Returns (N, 4*planes, H-2, W-2) float32.

    samples_per_step (Nb): samples processed per grid step. Default 1 keeps >=2 grid
    steps at N=2 (good for v7x's two TensorCores); on v5e/v6e set Nb=N to fold the
    whole batch into one step and amortize the per-step pipeline overhead.
    """
    N, Cin, H, W = x_nchw.shape
    w1d, w2d, w3d, b1d, b2d, b3d = _fold_and_densify(params, W)
    P = w1d.shape[1] // W
    C4 = w3d.shape[1] // W
    assert Cin == C4, "residual add requires inplanes == 4*planes (downsample=None)"
    Ho, Wo = H - 2, W - 2
    Nb = samples_per_step
    assert N % Nb == 0

    # NCHW -> NHWC -> lane-dense flat (N, H, W*Cin), bf16 for the MXU.
    x_flat = jnp.transpose(x_nchw, (0, 2, 3, 1)).reshape(N, H, W * Cin).astype(jnp.bfloat16)

    out_flat = pl.pallas_call(
        bottleneck_kernel,
        out_shape=jax.ShapeDtypeStruct((N, Ho, W * C4), jnp.float32),
        grid_spec=pltpu.PrefetchScalarGridSpec(
            num_scalar_prefetch=0,
            grid=(N // Nb,),
            in_specs=[
                pl.BlockSpec((Nb, H, W * Cin), lambda b: (b, 0, 0)),
                pl.BlockSpec((W * Cin, W * P), lambda b: (0, 0)),
                pl.BlockSpec((3, W * P, W * P), lambda b: (0, 0, 0)),
                pl.BlockSpec((W * P, W * C4), lambda b: (0, 0)),
                pl.BlockSpec((1, W * P), lambda b: (0, 0)),
                pl.BlockSpec((1, W * P), lambda b: (0, 0)),
                pl.BlockSpec((1, W * C4), lambda b: (0, 0)),
            ],
            out_specs=pl.BlockSpec((Nb, Ho, W * C4), lambda b: (b, 0, 0)),
        ),
        compiler_params=pltpu.CompilerParams(
            dimension_semantics=("parallel",),          # batch steps fully independent
            vmem_limit_bytes=32 * 1024 * 1024,
        ),
    )(x_flat, w1d, w2d, w3d, b1d, b2d, b3d)

    # Junk-column crop (valid output column j lives at lanes [(j+1)*C4, (j+2)*C4)),
    # fused with the NHWC -> NCHW boundary transpose.
    out = out_flat.reshape(N, Ho, W, C4)[:, :, 1:1 + Wo, :]
    return jnp.transpose(out, (0, 3, 1, 2))


def make_params(key, inplanes, planes, eps=1e-5):
    """Deterministic synthetic parameters (kernel-friendly layouts).
    Correspondence to PyTorch layouts:
      conv1.weight (P, Cin, 1, 1)  -> w1  (Cin, P)     [transpose]
      conv2.weight (P, P, 3, 3)    -> w2  (9, P, P)    [w2[kh*3+kw] = weight[:, :, kh, kw].T]
      conv3.weight (4P, P, 1, 1)   -> w3  (P, 4P)      [transpose]
      bnX gamma/beta/mean/var      -> folded inference scale/bias
    """
    ks = jax.random.split(key, 15)
    P, C4 = planes, planes * 4

    w1 = jax.random.normal(ks[0], (inplanes, P), jnp.float32) * 0.1
    w2 = jax.random.normal(ks[1], (9, P, P), jnp.float32) * 0.1
    w3 = jax.random.normal(ks[2], (P, C4), jnp.float32) * 0.1

    def bn(kg, kb, km, kv, c):
        gamma = 1.0 + 0.1 * jax.random.normal(kg, (c,), jnp.float32)
        beta = 0.1 * jax.random.normal(kb, (c,), jnp.float32)
        mean = 0.1 * jax.random.normal(km, (c,), jnp.float32)
        var = jnp.abs(jax.random.normal(kv, (c,), jnp.float32)) + 0.5
        scale = gamma / jnp.sqrt(var + eps)
        bias = beta - mean * scale
        return scale.reshape(1, c), bias.reshape(1, c)

    s1, b1 = bn(ks[3], ks[4], ks[5], ks[6], P)
    s2, b2 = bn(ks[7], ks[8], ks[9], ks[10], P)
    s3, b3 = bn(ks[11], ks[12], ks[13], ks[14], C4)
    return (w1, w2, w3, s1, b1, s2, b2, s3, b3)


def reference_forward(x_nchw, params):
    """Plain-JAX reference with identical numerics (folded bf16 weights, bf16 matmul
    operands, fp32 accumulation, fp32 bias/ReLU/residual)."""
    w1f, w2f, w3f, b1, b2, b3 = _fold_params(params)
    P = w1f.shape[1]

    # Emulate bf16 MXU (bf16 operands, f32 accumulate) by upcasting bf16 values to f32.
    x = jnp.transpose(x_nchw, (0, 2, 3, 1)).astype(jnp.bfloat16).astype(jnp.float32)
    w1r = w1f.astype(jnp.float32)
    w2r = w2f.astype(jnp.float32).reshape(3, 3, P, P)   # HWIO
    w3r = w3f.astype(jnp.float32)

    h1 = jnp.maximum(jnp.einsum('nhwc,cp->nhwp', x, w1r) + b1, 0.0)
    h1 = h1.astype(jnp.bfloat16).astype(jnp.float32)
    h2 = lax.conv_general_dilated(
        h1, w2r, window_strides=(1, 1), padding='VALID',
        dimension_numbers=('NHWC', 'HWIO', 'NHWC'))
    h2 = jnp.maximum(h2 + b2, 0.0)
    h2 = h2.astype(jnp.bfloat16).astype(jnp.float32)
    h3 = jnp.einsum('nhwp,pq->nhwq', h2, w3r) + b3
    res = x[:, 1:-1, 1:-1, :]
    out = jnp.maximum(h3 + res, 0.0)
    return jnp.transpose(out, (0, 3, 1, 2))


if __name__ == "__main__":
    # Small shapes: batch=2, inplanes=16, planes=4 (4*planes == inplanes, matching
    # downsample=None + residual add), spatial=16x16, stride=1.
    N, inplanes, planes, H, W = 2, 16, 4, 16, 16

    key = jax.random.PRNGKey(0)
    kx, kp = jax.random.split(key)
    x = jax.random.normal(kx, (N, inplanes, H, W), jnp.float32)
    params = make_params(kp, inplanes, planes)

    out = jax.block_until_ready(bottleneck_nop_pallas(x, params))
    ref = jax.block_until_ready(reference_forward(x, params))

    assert out.shape == (N, planes * 4, H - 2, W - 2), out.shape
    assert jnp.allclose(out, ref, atol=1e-2, rtol=1e-2), float(jnp.max(jnp.abs(out - ref)))

    print("KERNEL_OK")
</pallas_src>

<mosaic_0001>
module attributes {stable_mosaic.version = 11 : i64} {
  func.func @bottleneck_kernel(%arg0: i32, %arg1: memref<1x16x256xbf16, #tpu.memory_space<vmem>>, %arg2: memref<256x64xbf16, #tpu.memory_space<vmem>>, %arg3: memref<3x64x64xbf16, #tpu.memory_space<vmem>>, %arg4: memref<64x256xbf16, #tpu.memory_space<vmem>>, %arg5: memref<1x64xf32, #tpu.memory_space<vmem>>, %arg6: memref<1x64xf32, #tpu.memory_space<vmem>>, %arg7: memref<1x256xf32, #tpu.memory_space<vmem>>, %arg8: memref<1x14x256xf32, #tpu.memory_space<vmem>>) attributes {dimension_semantics = [#tpu.dimension_semantics<parallel>], iteration_bounds = array<i64: 2>, scalar_prefetch = 0 : i64, scratch_operands = 0 : i64, tpu.core_type = #tpu.core_type<tc>, window_params = [{transform_indices = @transform_0, window_bounds = array<i64: 1, 16, 256>}, {pipeline_mode = #tpu.pipeline_mode<synchronous>, transform_indices = @transform_1, window_bounds = array<i64: 256, 64>}, {pipeline_mode = #tpu.pipeline_mode<synchronous>, transform_indices = @transform_2, window_bounds = array<i64: 3, 64, 64>}, {pipeline_mode = #tpu.pipeline_mode<synchronous>, transform_indices = @transform_3, window_bounds = array<i64: 64, 256>}, {pipeline_mode = #tpu.pipeline_mode<synchronous>, transform_indices = @transform_4, window_bounds = array<i64: 1, 64>}, {pipeline_mode = #tpu.pipeline_mode<synchronous>, transform_indices = @transform_5, window_bounds = array<i64: 1, 64>}, {pipeline_mode = #tpu.pipeline_mode<synchronous>, transform_indices = @transform_6, window_bounds = array<i64: 1, 256>}, {transform_indices = @transform_7, window_bounds = array<i64: 1, 14, 256>}]} {
    %c0 = arith.constant 0 : index
    %c0_0 = arith.constant 0 : index
    %c0_1 = arith.constant 0 : index
    %0 = vector.load %arg1[%c0, %c0_0, %c0_1] : memref<1x16x256xbf16, #tpu.memory_space<vmem>>, vector<1x16x256xbf16>
    %1 = vector.shape_cast %0 : vector<1x16x256xbf16> to vector<16x256xbf16>
    %c0_2 = arith.constant 0 : index
    %c0_3 = arith.constant 0 : index
    %2 = vector.load %arg2[%c0_2, %c0_3] : memref<256x64xbf16, #tpu.memory_space<vmem>>, vector<256x64xbf16>
    %cst = arith.constant dense<0.000000e+00> : vector<16x64xf32>
    %3 = tpu.matmul %1, %2, %cst {dimension_numbers = #tpu.dot_dimension_numbers<[1], [0], [0], [1], [0, 0, 1, 1], [], []>} : vector<16x256xbf16>, vector<256x64xbf16>, vector<16x64xf32> -> vector<16x64xf32>
    %c0_4 = arith.constant 0 : index
    %c0_5 = arith.constant 0 : index
    %4 = vector.load %arg5[%c0_4, %c0_5] : memref<1x64xf32, #tpu.memory_space<vmem>>, vector<1x64xf32>
    %5 = vector.broadcast %4 : vector<1x64xf32> to vector<16x64xf32>
    %6 = arith.addf %3, %5 : vector<16x64xf32>
    %cst_6 = arith.constant 0.000000e+00 : f32
    %7 = vector.broadcast %cst_6 : f32 to vector<16x64xf32>
    %8 = arith.maximumf %6, %7 : vector<16x64xf32>
    %9 = arith.truncf %8 : vector<16x64xf32> to vector<16x64xbf16>
    %c0_7 = arith.constant 0 : index
    %c0_8 = arith.constant 0 : index
    %c0_9 = arith.constant 0 : index
    %10 = vector.load %arg3[%c0_7, %c0_8, %c0_9] : memref<3x64x64xbf16, #tpu.memory_space<vmem>>, vector<1x64x64xbf16>
    %11 = vector.shape_cast %10 : vector<1x64x64xbf16> to vector<64x64xbf16>
    %cst_10 = arith.constant dense<0.000000e+00> : vector<16x64xf32>
    %12 = tpu.matmul %9, %11, %cst_10 {dimension_numbers = #tpu.dot_dimension_numbers<[1], [0], [0], [1], [0, 0, 1, 1], [], []>} : vector<16x64xbf16>, vector<64x64xbf16>, vector<16x64xf32> -> vector<16x64xf32>
    %c1 = arith.constant 1 : index
    %c0_11 = arith.constant 0 : index
    %c0_12 = arith.constant 0 : index
    %13 = vector.load %arg3[%c1, %c0_11, %c0_12] : memref<3x64x64xbf16, #tpu.memory_space<vmem>>, vector<1x64x64xbf16>
    %14 = vector.shape_cast %13 : vector<1x64x64xbf16> to vector<64x64xbf16>
    %cst_13 = arith.constant dense<0.000000e+00> : vector<16x64xf32>
    %15 = tpu.matmul %9, %14, %cst_13 {dimension_numbers = #tpu.dot_dimension_numbers<[1], [0], [0], [1], [0, 0, 1, 1], [], []>} : vector<16x64xbf16>, vector<64x64xbf16>, vector<16x64xf32> -> vector<16x64xf32>
    %c2 = arith.constant 2 : index
    %c0_14 = arith.constant 0 : index
    %c0_15 = arith.constant 0 : index
    %16 = vector.load %arg3[%c2, %c0_14, %c0_15] : memref<3x64x64xbf16, #tpu.memory_space<vmem>>, vector<1x64x64xbf16>
    %17 = vector.shape_cast %16 : vector<1x64x64xbf16> to vector<64x64xbf16>
    %cst_16 = arith.constant dense<0.000000e+00> : vector<16x64xf32>
    %18 = tpu.matmul %9, %17, %cst_16 {dimension_numbers = #tpu.dot_dimension_numbers<[1], [0], [0], [1], [0, 0, 1, 1], [], []>} : vector<16x64xbf16>, vector<64x64xbf16>, vector<16x64xf32> -> vector<16x64xf32>
    %19 = vector.extract_strided_slice %12 {offsets = [0, 0], sizes = [14, 64], strides = [1, 1]} : vector<16x64xf32> to vector<14x64xf32>
    %20 = vector.extract_strided_slice %15 {offsets = [1, 0], sizes = [14, 64], strides = [1, 1]} : vector<16x64xf32> to vector<14x64xf32>
    %21 = arith.addf %19, %20 : vector<14x64xf32>
    %22 = vector.extract_strided_slice %18 {offsets = [2, 0], sizes = [14, 64], strides = [1, 1]} : vector<16x64xf32> to vector<14x64xf32>
    %23 = arith.addf %21, %22 : vector<14x64xf32>
    %c0_17 = arith.constant 0 : index
    %c0_18 = arith.constant 0 : index
    %24 = vector.load %arg6[%c0_17, %c0_18] : memref<1x64xf32, #tpu.memory_space<vmem>>, vector<1x64xf32>
    %25 = vector.broadcast %24 : vector<1x64xf32> to vector<14x64xf32>
    %26 = arith.addf %23, %25 : vector<14x64xf32>
    %cst_19 = arith.constant 0.000000e+00 : f32
    %27 = vector.broadcast %cst_19 : f32 to vector<14x64xf32>
    %28 = arith.maximumf %26, %27 : vector<14x64xf32>
    %29 = arith.truncf %28 : vector<14x64xf32> to vector<14x64xbf16>
    %c0_20 = arith.constant 0 : index
    %c0_21 = arith.constant 0 : index
    %30 = vector.load %arg4[%c0_20, %c0_21] : memref<64x256xbf16, #tpu.memory_space<vmem>>, vector<64x256xbf16>
    %cst_22 = arith.constant dense<0.000000e+00> : vector<14x256xf32>
    %31 = tpu.matmul %29, %30, %cst_22 {dimension_numbers = #tpu.dot_dimension_numbers<[1], [0], [0], [1], [0, 0, 1, 1], [], []>} : vector<14x64xbf16>, vector<64x256xbf16>, vector<14x256xf32> -> vector<14x256xf32>
    %c0_23 = arith.constant 0 : index
    %c0_24 = arith.constant 0 : index
    %32 = vector.load %arg7[%c0_23, %c0_24] : memref<1x256xf32, #tpu.memory_space<vmem>>, vector<1x256xf32>
    %33 = vector.broadcast %32 : vector<1x256xf32> to vector<14x256xf32>
    %34 = arith.addf %31, %33 : vector<14x256xf32>
    %35 = arith.extf %1 : vector<16x256xbf16> to vector<16x256xf32>
    %36 = vector.extract_strided_slice %35 {offsets = [1, 0], sizes = [14, 256], strides = [1, 1]} : vector<16x256xf32> to vector<14x256xf32>
    %37 = arith.addf %34, %36 : vector<14x256xf32>
    %cst_25 = arith.constant 0.000000e+00 : f32
    %38 = vector.broadcast %cst_25 : f32 to vector<14x256xf32>
    %39 = arith.maximumf %37, %38 : vector<14x256xf32>
    %c0_26 = arith.constant 0 : index
    %c0_27 = arith.constant 0 : index
    %c0_28 = arith.constant 0 : index
    %40 = vector.load %arg8[%c0_26, %c0_27, %c0_28] : memref<1x14x256xf32, #tpu.memory_space<vmem>>, vector<1x14x256xf32>
    %41 = vector.shape_cast %40 : vector<1x14x256xf32> to vector<14x256xf32>
    %42 = vector.shape_cast %39 : vector<14x256xf32> to vector<1x14x256xf32>
    tpu.vector_store %arg8[%c0_26, %c0_27, %c0_28], %42 {strides = array<i32>} : memref<1x14x256xf32, #tpu.memory_space<vmem>>, vector<1x14x256xf32>,
    return
  }
  func.func @transform_0(%arg0: i32) -> (i32, i32, i32) {
    %c0_i32 = arith.constant 0 : i32
    %c0_i32_0 = arith.constant 0 : i32
    %c0_i32_1 = arith.constant 0 : i32
    return %arg0, %c0_i32, %c0_i32_0 : i32, i32, i32
  }
  func.func @transform_1(%arg0: i32) -> (i32, i32) {
    %c0_i32 = arith.constant 0 : i32
    %c0_i32_0 = arith.constant 0 : i32
    %c0_i32_1 = arith.constant 0 : i32
    return %c0_i32, %c0_i32_0 : i32, i32
  }
  func.func @transform_2(%arg0: i32) -> (i32, i32, i32) {
    %c0_i32 = arith.constant 0 : i32
    %c0_i32_0 = arith.constant 0 : i32
    %c0_i32_1 = arith.constant 0 : i32
    %c0_i32_2 = arith.constant 0 : i32
    return %c0_i32, %c0_i32_0, %c0_i32_1 : i32, i32, i32
  }
  func.func @transform_3(%arg0: i32) -> (i32, i32) {
    %c0_i32 = arith.constant 0 : i32
    %c0_i32_0 = arith.constant 0 : i32
    %c0_i32_1 = arith.constant 0 : i32
    return %c0_i32, %c0_i32_0 : i32, i32
  }
  func.func @transform_4(%arg0: i32) -> (i32, i32) {
    %c0_i32 = arith.constant 0 : i32
    %c0_i32_0 = arith.constant 0 : i32
    %c0_i32_1 = arith.constant 0 : i32
    return %c0_i32, %c0_i32_0 : i32, i32
  }
  func.func @transform_5(%arg0: i32) -> (i32, i32) {
    %c0_i32 = arith.constant 0 : i32
    %c0_i32_0 = arith.constant 0 : i32
    %c0_i32_1 = arith.constant 0 : i32
    return %c0_i32, %c0_i32_0 : i32, i32
  }
  func.func @transform_6(%arg0: i32) -> (i32, i32) {
    %c0_i32 = arith.constant 0 : i32
    %c0_i32_0 = arith.constant 0 : i32
    %c0_i32_1 = arith.constant 0 : i32
    return %c0_i32, %c0_i32_0 : i32, i32
  }
  func.func @transform_7(%arg0: i32) -> (i32, i32, i32) {
    %c0_i32 = arith.constant 0 : i32
    %c0_i32_0 = arith.constant 0 : i32
    %c0_i32_1 = arith.constant 0 : i32
    return %arg0, %c0_i32, %c0_i32_0 : i32, i32, i32
  }
}

</mosaic_0001>

<llo_original>
// kernel: tpu_custom_call.1
$region0: #{tpu_custom_call.1}
  #allocation0 [shape = 'u32[]', space=smem, size = 0x4, offset = 0x4, fixed_abs, tag = 'smem constant byte address 0x4 - core index']
  #allocation1 [shape = 'u32[144,128]{1,0:T(1,128)}', space=vmem, size = 0x12000, scoped, tag = 'internal scratch']
  %s0 = inlined_call_operand.vmem [shape: bf16[2,16,256], index: 0, kind: input, shape index: {}]
  %s1 = inlined_call_operand.vmem [shape: bf16[256,64], index: 1, kind: input, shape index: {}]
  %s2 = inlined_call_operand.vmem [shape: bf16[3,64,64], index: 2, kind: input, shape index: {}]
  %s3 = inlined_call_operand.vmem [shape: bf16[64,256], index: 3, kind: input, shape index: {}]
  %s4 = inlined_call_operand.vmem [shape: f32[1,64], index: 4, kind: input, shape index: {}]
  %s5 = inlined_call_operand.vmem [shape: f32[1,64], index: 5, kind: input, shape index: {}]
  %s6 = inlined_call_operand.vmem [shape: f32[1,256], index: 6, kind: input, shape index: {}]
  %s7 = inlined_call_operand.vmem [shape: f32[2,14,256], index: 7, kind: output, shape index: {}]
  %s8 = sld [smem:[#allocation0]]
  $region61: #{tpu_custom_call.1} parent=0
    _
  %s10 = ssub.s32 1, %s8
  %s11 = scalar_select 0, %s10, %s8
  loop: start=0, step=1, limit=4
  $region2: #{tpu_custom_call.1} parent=0 // loop_pre_header
    _
  $region3: #{tpu_custom_call.1} parent=0 // loop_header
    %s13 = sphi 0, %s17
    %p14 = scmp.ge.s32.totalorder %s13, 4
    %s23 = sphi 0, %s25
    %s26 = sphi 0, %s23
    %s27 = sphi 0, %s26
    %s43 = sphi 0, %s27
    %s47 = sphi 0, %s47
    %s49 = sphi 0, %s47
    %s50 = sphi 0, %s49
    %s64 = sphi 0, %s50
    %s68 = sphi 0, %s68
    %s70 = sphi 0, %s68
    %s71 = sphi 0, %s70
    %s85 = sphi 0, %s71
    %s89 = sphi 0, %s89
    %s91 = sphi 0, %s89
    %s92 = sphi 0, %s91
    %s106 = sphi 0, %s92
    %s110 = sphi 0, %s110
    %s112 = sphi 0, %s110
    %s113 = sphi 0, %s112
    %s127 = sphi 0, %s113
    %s131 = sphi 0, %s131
    %s133 = sphi 0, %s131
    %s134 = sphi 0, %s133
    %s148 = sphi 0, %s134
    %s152 = sphi 0, %s152
    %s154 = sphi 0, %s152
    %s155 = sphi 0, %s154
    %s169 = sphi 0, %s155
    %s175 = sphi 0, %s177
    %s178 = sphi 0, %s175
    %s179 = sphi 0, %s178
    %s195 = sphi 0, %s179
  $region4: #{tpu_custom_call.1} parent=0 // loop_header_branch
    %16 = sbr.rel (%p14) target = $region8
  $region5: #{tpu_custom_call.1} parent=0 // loop_body
    %s18 = ssub.s32 %s13, 1
    %s19 = ssub.s32 %s13, 2
    %s20 = sadd.s32 %s13, 1
    %s21 = ssub.s32 %s13, %s20
    %p22 = scmp.eq.s32.totalorder %s21, 0
    %s24 = sadd.s32 %s23, 1
    %s25 = scalar_select %p22, %s23, %s24
    %p28 = pneg %p22
    %p29 = scmp.eq.s32.totalorder %s13, 1
    %p30 = por %p28, %p29
    %p31 = scmp.ne.s32.totalorder %s23, %s26
    %p32 = scmp.eq.s32.totalorder %s13, 0
    %p33 = por %p31, %p32
    %p34 = scmp.ne.s32.totalorder %s23, %s26
    %p35 = scmp.eq.s32.totalorder %s18, 1
    %p36 = por %p34, %p35
    %p37 = scmp.ne.s32.totalorder %s26, %s27
    %p38 = scmp.eq.s32.totalorder %s18, 0
    %p39 = por %p37, %p38
    %p40 = scmp.ne.s32.totalorder %s26, %s27
    %p41 = scmp.eq.s32.totalorder %s19, 1
    %p42 = por %p40, %p41
    %p44 = scmp.ne.s32.totalorder %s27, %s43
    %p45 = scmp.eq.s32.totalorder %s19, 0
    %p46 = por %p44, %p45
    %s48 = sadd.s32 %s47, 1
    %p51 = scmp.eq.s32.totalorder %s13, 1
    %p52 = scmp.ne.s32.totalorder %s47, %s49
    %p53 = scmp.eq.s32.totalorder %s13, 0
    %p54 = por %p52, %p53
    %p55 = scmp.ne.s32.totalorder %s47, %s49
    %p56 = scmp.eq.s32.totalorder %s18, 1
    %p57 = por %p55, %p56
    %p58 = scmp.ne.s32.totalorder %s49, %s50
    %p59 = scmp.eq.s32.totalorder %s18, 0
    %p60 = por %p58, %p59
    %p61 = scmp.ne.s32.totalorder %s49, %s50
    %p62 = scmp.eq.s32.totalorder %s19, 1
    %p63 = por %p61, %p62
    %p65 = scmp.ne.s32.totalorder %s50, %s64
    %p66 = scmp.eq.s32.totalorder %s19, 0
    %p67 = por %p65, %p66
    %s69 = sadd.s32 %s68, 1
    %p72 = scmp.eq.s32.totalorder %s13, 1
    %p73 = scmp.ne.s32.totalorder %s68, %s70
    %p74 = scmp.eq.s32.totalorder %s13, 0
    %p75 = por %p73, %p74
    %p76 = scmp.ne.s32.totalorder %s68, %s70
    %p77 = scmp.eq.s32.totalorder %s18, 1
    %p78 = por %p76, %p77
    %p79 = scmp.ne.s32.totalorder %s70, %s71
    %p80 = scmp.eq.s32.totalorder %s18, 0
    %p81 = por %p79, %p80
    %p82 = scmp.ne.s32.totalorder %s70, %s71
    %p83 = scmp.eq.s32.totalorder %s19, 1
    %p84 = por %p82, %p83
    %p86 = scmp.ne.s32.totalorder %s71, %s85
    %p87 = scmp.eq.s32.totalorder %s19, 0
    %p88 = por %p86, %p87
    %s90 = sadd.s32 %s89, 1
    %p93 = scmp.eq.s32.totalorder %s13, 1
    %p94 = scmp.ne.s32.totalorder %s89, %s91
    %p95 = scmp.eq.s32.totalorder %s13, 0
    %p96 = por %p94, %p95
    %p97 = scmp.ne.s32.totalorder %s89, %s91
    %p98 = scmp.eq.s32.totalorder %s18, 1
    %p99 = por %p97, %p98
    %p100 = scmp.ne.s32.totalorder %s91, %s92
    %p101 = scmp.eq.s32.totalorder %s18, 0
    %p102 = por %p100, %p101
    %p103 = scmp.ne.s32.totalorder %s91, %s92
    %p104 = scmp.eq.s32.totalorder %s19, 1
    %p105 = por %p103, %p104
    %p107 = scmp.ne.s32.totalorder %s92, %s106
    %p108 = scmp.eq.s32.totalorder %s19, 0
    %p109 = por %p107, %p108
    %s111 = sadd.s32 %s110, 1
    %p114 = scmp.eq.s32.totalorder %s13, 1
    %p115 = scmp.ne.s32.totalorder %s110, %s112
    %p116 = scmp.eq.s32.totalorder %s13, 0
    %p117 = por %p115, %p116
    %p118 = scmp.ne.s32.totalorder %s110, %s112
    %p119 = scmp.eq.s32.totalorder %s18, 1
    %p120 = por %p118, %p119
    %p121 = scmp.ne.s32.totalorder %s112, %s113
    %p122 = scmp.eq.s32.totalorder %s18, 0
    %p123 = por %p121, %p122
    %p124 = scmp.ne.s32.totalorder %s112, %s113
    %p125 = scmp.eq.s32.totalorder %s19, 1
    %p126 = por %p124, %p125
    %p128 = scmp.ne.s32.totalorder %s113, %s127
    %p129 = scmp.eq.s32.totalorder %s19, 0
    %p130 = por %p128, %p129
    %s132 = sadd.s32 %s131, 1
    %p135 = scmp.eq.s32.totalorder %s13, 1
    %p136 = scmp.ne.s32.totalorder %s131, %s133
    %p137 = scmp.eq.s32.totalorder %s13, 0
    %p138 = por %p136, %p137
    %p139 = scmp.ne.s32.totalorder %s131, %s133
    %p140 = scmp.eq.s32.totalorder %s18, 1
    %p141 = por %p139, %p140
    %p142 = scmp.ne.s32.totalorder %s133, %s134
    %p143 = scmp.eq.s32.totalorder %s18, 0
    %p144 = por %p142, %p143
    %p145 = scmp.ne.s32.totalorder %s133, %s134
    %p146 = scmp.eq.s32.totalorder %s19, 1
    %p147 = por %p145, %p146
    %p149 = scmp.ne.s32.totalorder %s134, %s148
    %p150 = scmp.eq.s32.totalorder %s19, 0
    %p151 = por %p149, %p150
    %s153 = sadd.s32 %s152, 1
    %p156 = scmp.eq.s32.totalorder %s13, 1
    %p157 = scmp.ne.s32.totalorder %s152, %s154
    %p158 = scmp.eq.s32.totalorder %s13, 0
    %p159 = por %p157, %p158
    %p160 = scmp.ne.s32.totalorder %s152, %s154
    %p161 = scmp.eq.s32.totalorder %s18, 1
    %p162 = por %p160, %p161
    %p163 = scmp.ne.s32.totalorder %s154, %s155
    %p164 = scmp.eq.s32.totalorder %s18, 0
    %p165 = por %p163, %p164
    %p166 = scmp.ne.s32.totalorder %s154, %s155
    %p167 = scmp.eq.s32.totalorder %s19, 1
    %p168 = por %p166, %p167
    %p170 = scmp.ne.s32.totalorder %s155, %s169
    %p171 = scmp.eq.s32.totalorder %s19, 0
    %p172 = por %p170, %p171
    %s173 = ssub.s32 %s13, %s20
    %p174 = scmp.eq.s32.totalorder %s173, 0
    %s176 = sadd.s32 %s175, 1
    %s177 = scalar_select %p174, %s175, %s176
    %p180 = pneg %p174
    %p181 = scmp.eq.s32.totalorder %s13, 1
    %p182 = por %p180, %p181
    %p183 = scmp.ne.s32.totalorder %s175, %s178
    %p184 = scmp.eq.s32.totalorder %s13, 0
    %p185 = por %p183, %p184
    %p186 = scmp.ne.s32.totalorder %s175, %s178
    %p187 = scmp.eq.s32.totalorder %s18, 1
    %p188 = por %p186, %p187
    %p189 = scmp.ne.s32.totalorder %s178, %s179
    %p190 = scmp.eq.s32.totalorder %s18, 0
    %p191 = por %p189, %p190
    %p192 = scmp.ne.s32.totalorder %s178, %s179
    %p193 = scmp.eq.s32.totalorder %s19, 1
    %p194 = por %p192, %p193
    %p196 = scmp.ne.s32.totalorder %s179, %s195
    %p197 = scmp.eq.s32.totalorder %s19, 0
    %p198 = por %p196, %p197
    %p199 = scmp.le.s32.totalorder 1, %s13
    %p200 = scmp.lt.s32.totalorder %s13, 3
    %p201 = pnand %p199, %p200
    %p202 = pneg %p201
    // Predicated region
    $region9: #{tpu_custom_call.1} parent=5 // pred_check
      _
    $region10: #{tpu_custom_call.1} parent=5 // pred_check_branch
      %204 = sbr.rel (%p201) target = $region12
    $region11: #{tpu_custom_call.1} parent=5 // pred_region
      %s205 = ssub.s32 %s13, 1
      // Predicated region
      $region13: #{tpu_custom_call.1} parent=11 // pred_check
        %p206 = pneg %p60
      $region14: #{tpu_custom_call.1} parent=11 // pred_check_branch
        %208 = sbr.rel (%p206) target = $region16
      $region15: #{tpu_custom_call.1} parent=11 // pred_region
        _
      $region16: #{tpu_custom_call.1} parent=11 // pred_fallthru
        _
      // Predicated region
      $region17: #{tpu_custom_call.1} parent=11 // pred_check
        %p209 = pneg %p81
      $region18: #{tpu_custom_call.1} parent=11 // pred_check_branch
        %211 = sbr.rel (%p209) target = $region20
      $region19: #{tpu_custom_call.1} parent=11 // pred_region
        _
      $region20: #{tpu_custom_call.1} parent=11 // pred_fallthru
        _
      // Predicated region
      $region21: #{tpu_custom_call.1} parent=11 // pred_check
        %p212 = pneg %p102
      $region22: #{tpu_custom_call.1} parent=11 // pred_check_branch
        %214 = sbr.rel (%p212) target = $region24
      $region23: #{tpu_custom_call.1} parent=11 // pred_region
        _
      $region24: #{tpu_custom_call.1} parent=11 // pred_fallthru
        _
      // Predicated region
      $region25: #{tpu_custom_call.1} parent=11 // pred_check
        %p215 = pneg %p123
      $region26: #{tpu_custom_call.1} parent=11 // pred_check_branch
        %217 = sbr.rel (%p215) target = $region28
      $region27: #{tpu_custom_call.1} parent=11 // pred_region
        _
      $region28: #{tpu_custom_call.1} parent=11 // pred_fallthru
        _
      // Predicated region
      $region29: #{tpu_custom_call.1} parent=11 // pred_check
        %p218 = pneg %p144
      $region30: #{tpu_custom_call.1} parent=11 // pred_check_branch
        %220 = sbr.rel (%p218) target = $region32
      $region31: #{tpu_custom_call.1} parent=11 // pred_region
        _
      $region32: #{tpu_custom_call.1} parent=11 // pred_fallthru
        _
      // Predicated region
      $region33: #{tpu_custom_call.1} parent=11 // pred_check
        %p221 = pneg %p165
      $region34: #{tpu_custom_call.1} parent=11 // pred_check_branch
        %223 = sbr.rel (%p221) target = $region36
      $region35: #{tpu_custom_call.1} parent=11 // pred_region
        _
      $region36: #{tpu_custom_call.1} parent=11 // pred_fallthru
        _
    $region12: #{tpu_custom_call.1} parent=5 // pred_fallthru
      _
    %p224 = scmp.lt.s32.totalorder %s13, 2
    // Predicated region
    $region37: #{tpu_custom_call.1} parent=5 // pred_check
      %p225 = pneg %p224
    $region38: #{tpu_custom_call.1} parent=5 // pred_check_branch
      %227 = sbr.rel (%p225) target = $region40
    $region39: #{tpu_custom_call.1} parent=5 // pred_region
      // Predicated region
      $region41: #{tpu_custom_call.1} parent=39 // pred_check
        %p228 = pneg %p33
      $region42: #{tpu_custom_call.1} parent=39 // pred_check_branch
        %230 = sbr.rel (%p228) target = $region44
      $region43: #{tpu_custom_call.1} parent=39 // pred_region
        %p231 = scmp.lt.s32.totalorder %s13, 1
        %s232 = scalar_select %p231, %s13, 1
        %s233 = smul.addr %s232, 4
        %s234 = smul.addr %s233, 4
        %s235 = scalar_lea.vmem %s0, %s234
      $region44: #{tpu_custom_call.1} parent=39 // pred_fallthru
        _
    $region40: #{tpu_custom_call.1} parent=5 // pred_fallthru
      _
    %p236 = scmp.le.s32.totalorder 1, %s13
    %p237 = scmp.lt.s32.totalorder %s13, 3
    %p238 = pnand %p236, %p237
    %p239 = pneg %p238
    // Predicated region
    $region45: #{tpu_custom_call.1} parent=5 // pred_check
      _
    $region46: #{tpu_custom_call.1} parent=5 // pred_check_branch
      %241 = sbr.rel (%p238) target = $region48
    $region47: #{tpu_custom_call.1} parent=5 // pred_region
      %s242 = ssub.s32 %s13, 1
      %p243 = scmp.lt.s32.totalorder %s18, 1
      %s244 = scalar_select %p243, %s18, 1
      %s245 = smul.addr %s244, 4
      %s246 = smul.addr %s245, 4
      %s247 = scalar_lea.vmem %s0, %s246
      %p248 = pneg %p39
      %p249 = pneg %p36
      %p250 = pneg %p60
      %p251 = pneg %p57
      %p252 = pneg %p81
      %p253 = pneg %p78
      %p254 = pneg %p102
      %p255 = pneg %p99
      %p256 = pneg %p123
      %p257 = pneg %p120
      %p258 = pneg %p144
      %p259 = pneg %p141
      %p260 = pneg %p165
      %p261 = pneg %p162
      %p262 = pneg %p191
      %p263 = pneg %p188
      %p264 = scmp.lt.s32.totalorder %s18, 1
      %s265 = scalar_select %p264, %s18, 1
      %s266 = smul.addr %s265, 4
      %s267 = smul.addr %s266, 8
      %s268 = scalar_lea.vmem %s7, %s267
      %p269 = scmp.lt.s32.totalorder %s18, 1
      %s270 = scalar_select %p269, %s18, 1
      %s271 = smul.addr %s270, 4
      %s272 = smul.addr %s271, 4
      %s273 = scalar_lea.vmem %s0, %s272
      %p274 = scmp.lt.s32.totalorder %s18, 1
      %s275 = scalar_select %p274, %s18, 1
      %s276 = smul.addr %s275, 4
      %s277 = smul.addr %s276, 8
      %s278 = scalar_lea.vmem %s7, %s277
      %v280 = vld [vmem:[%s273] sm:$0xff]
      %v281 = vld [vmem:[%s273 + $0x8] sm:$0xff]
      %v282 = vld [vmem:[%s1] sm:$0xf]
      %v283 = vld [vmem:[%s1 + $0x4] sm:$0xf]
      %v284 = vld [vmem:[%s1 + $0x8] sm:$0xf]
      %v285 = vld [vmem:[%s1 + $0xc] sm:$0xf]
      %v286 = vld [vmem:[%s1 + $0x10] sm:$0xf]
      %v287 = vld [vmem:[%s1 + $0x14] sm:$0xf]
      %v288 = vld [vmem:[%s1 + $0x18] sm:$0xf]
      %v289 = vld [vmem:[%s1 + $0x1c] sm:$0xf]
      %v290 = vld [vmem:[%s1 + $0x20] sm:$0xf]
      %v291 = vld [vmem:[%s1 + $0x24] sm:$0xf]
      %v292 = vld [vmem:[%s1 + $0x28] sm:$0xf]
      %v293 = vld [vmem:[%s1 + $0x2c] sm:$0xf]
      %v294 = vld [vmem:[%s1 + $0x30] sm:$0xf]
      %v295 = vld [vmem:[%s1 + $0x34] sm:$0xf]
      %v296 = vld [vmem:[%s1 + $0x38] sm:$0xf]
      %v297 = vld [vmem:[%s1 + $0x3c] sm:$0xf]
      %v298 = vld [vmem:[%s1 + $0x40] sm:$0xf]
      %v299 = vld [vmem:[%s1 + $0x44] sm:$0xf]
      %v300 = vld [vmem:[%s1 + $0x48] sm:$0xf]
      %v301 = vld [vmem:[%s1 + $0x4c] sm:$0xf]
      %v302 = vld [vmem:[%s1 + $0x50] sm:$0xf]
      %v303 = vld [vmem:[%s1 + $0x54] sm:$0xf]
      %v304 = vld [vmem:[%s1 + $0x58] sm:$0xf]
      %v305 = vld [vmem:[%s1 + $0x5c] sm:$0xf]
      %v306 = vld [vmem:[%s1 + $0x60] sm:$0xf]
      %v307 = vld [vmem:[%s1 + $0x64] sm:$0xf]
      %v308 = vld [vmem:[%s1 + $0x68] sm:$0xf]
      %v309 = vld [vmem:[%s1 + $0x6c] sm:$0xf]
      %v310 = vld [vmem:[%s1 + $0x70] sm:$0xf]
      %v311 = vld [vmem:[%s1 + $0x74] sm:$0xf]
      %v312 = vld [vmem:[%s1 + $0x78] sm:$0xf]
      %v313 = vld [vmem:[%s1 + $0x7c] sm:$0xf]
      %v314 = vld [vmem:[%s4] sm:$0x1]
      %v316 = vlaneseq
      %v317 = vshrl.u32 %v316, 7
      %v318 = vsub.s32 0, %v317
      %v319 = vrot.slane %v314, %v318
      %v323 = vunpack.c.l.b16 %v280
      %v324 = vunpack.c.h.b16 %v280
      %v325 = vunpack.c.l.b16 %v281
      %v326 = vunpack.c.h.b16 %v281
      %v327 = vpack.c.b16 %v325, %v323
      %v328 = vpack.c.b16 %v326, %v324
      %v363 = vunpack.c.l.b16 %v282
      %v364 = vunpack.c.l.b16 %v283
      %v365 = vunpack.c.l.b16 %v284
      %v366 = vunpack.c.l.b16 %v285
      %v367 = vunpack.c.l.b16 %v286
      %v368 = vunpack.c.l.b16 %v287
      %v369 = vunpack.c.l.b16 %v288
      %v370 = vunpack.c.l.b16 %v289
      %v371 = vunpack.c.l.b16 %v290
      %v372 = vunpack.c.l.b16 %v291
      %v373 = vunpack.c.l.b16 %v292
      %v374 = vunpack.c.l.b16 %v293
      %v375 = vunpack.c.l.b16 %v294
      %v376 = vunpack.c.l.b16 %v295
      %v377 = vunpack.c.l.b16 %v296
      %v378 = vunpack.c.l.b16 %v297
      %v379 = vunpack.c.l.b16 %v298
      %v380 = vunpack.c.l.b16 %v299
      %v381 = vunpack.c.l.b16 %v300
      %v382 = vunpack.c.l.b16 %v301
      %v383 = vunpack.c.l.b16 %v302
      %v384 = vunpack.c.l.b16 %v303
      %v385 = vunpack.c.l.b16 %v304
      %v386 = vunpack.c.l.b16 %v305
      %v387 = vunpack.c.l.b16 %v306
      %v388 = vunpack.c.l.b16 %v307
      %v389 = vunpack.c.l.b16 %v308
      %v390 = vunpack.c.l.b16 %v309
      %v391 = vunpack.c.l.b16 %v310
      %v392 = vunpack.c.l.b16 %v311
      %v393 = vunpack.c.l.b16 %v312
      %v394 = vunpack.c.l.b16 %v313
      %v395 = vpack.c.b16 %v364, %v363
      %v396 = vpack.c.b16 %v366, %v365
      %v397 = vpack.c.b16 %v368, %v367
      %v398 = vpack.c.b16 %v370, %v369
      %v399 = vpack.c.b16 %v372, %v371
      %v400 = vpack.c.b16 %v374, %v373
      %v401 = vpack.c.b16 %v376, %v375
      %v402 = vpack.c.b16 %v378, %v377
      %v403 = vpack.c.b16 %v380, %v379
      %v404 = vpack.c.b16 %v382, %v381
      %v405 = vpack.c.b16 %v384, %v383
      %v406 = vpack.c.b16 %v386, %v385
      %v407 = vpack.c.b16 %v388, %v387
      %v408 = vpack.c.b16 %v390, %v389
      %v409 = vpack.c.b16 %v392, %v391
      %v410 = vpack.c.b16 %v394, %v393
      %427 = vmatprep.subr.bf16.mxu0 0
      %428 = vmatpush1.bf16.msra.mxu0 %v395
      %429 = vmatprep.subr.bf16.mxu0 0
      %430 = vmatpush1.bf16.msra.mxu0 %v396
      %431 = vmatprep.subr.bf16.mxu0 0
      %432 = vmatpush1.bf16.msra.mxu0 %v397
      %433 = vmatprep.subr.bf16.mxu0 0
      %434 = vmatpush1.bf16.msra.mxu0 %v398
      %435 = vmatprep.subr.bf16.mxu0 0
      %436 = vmatpush1.bf16.msra.mxu0 %v399
      %437 = vmatprep.subr.bf16.mxu0 0
      %438 = vmatpush1.bf16.msra.mxu0 %v400
      %439 = vmatprep.subr.bf16.mxu0 0
      %440 = vmatpush1.bf16.msra.mxu0 %v401
      %441 = vmatprep.subr.bf16.mxu0 0
      %442 = vmatpush1.bf16.msra.mxu0 %v402
      %443 = vmatprep.subr.bf16.mxu0 0
      %444 = vmatpush1.bf16.msra.mxu0 %v403
      %445 = vmatprep.subr.bf16.mxu0 0
      %446 = vmatpush1.bf16.msra.mxu0 %v404
      %447 = vmatprep.subr.bf16.mxu0 0
      %448 = vmatpush1.bf16.msra.mxu0 %v405
      %449 = vmatprep.subr.bf16.mxu0 0
      %450 = vmatpush1.bf16.msra.mxu0 %v406
      %451 = vmatprep.subr.bf16.mxu0 0
      %452 = vmatpush1.bf16.msra.mxu0 %v407
      %453 = vmatprep.subr.bf16.mxu0 0
      %454 = vmatpush1.bf16.msra.mxu0 %v408
      %455 = vmatprep.subr.bf16.mxu0 0
      %456 = vmatpush1.bf16.msra.mxu0 %v409
      %457 = vmatprep.subr.bf16.mxu0 0
      %458 = vmatpush1.bf16.msra.mxu0 %v410
      %459 = vmatprep.mubr.bf16.mxu0 %v328
      %460 = vmatmul.mubr.bf16.gmra.mrb[0].mxu0 %v327
      %v461 = vpop.f32.mrb[0].mxu0
      %v462 = vadd.f32 %v319, %v461
      %v463 = vpop.f32.mrb[0].mxu0
      %v464 = vpop.f32.mrb[0].mxu0
      %v465 = vadd.f32 %v319, %v464
      %v466 = vpop.f32.mrb[0].mxu0
      %467 = vdwg.mxu0
      %v468 = vmax.f32 %v462, 0.0
      %v469 = vmax.f32 %v465, 0.0
      %v470 = vpack.c.bf16 %v469, %v468
      %v471 = vld [vmem:[%s2] sm:$0xf]
      %v472 = vld [vmem:[%s2 + $0x4] sm:$0xf]
      %v473 = vld [vmem:[%s2 + $0x8] sm:$0xf]
      %v474 = vld [vmem:[%s2 + $0xc] sm:$0xf]
      %v475 = vld [vmem:[%s2 + $0x10] sm:$0xf]
      %v476 = vld [vmem:[%s2 + $0x14] sm:$0xf]
      %v477 = vld [vmem:[%s2 + $0x18] sm:$0xf]
      %v478 = vld [vmem:[%s2 + $0x1c] sm:$0xf]
      %v487 = vunpack.c.l.b16 %v471
      %v488 = vunpack.c.l.b16 %v472
      %v489 = vunpack.c.l.b16 %v473
      %v490 = vunpack.c.l.b16 %v474
      %v491 = vunpack.c.l.b16 %v475
      %v492 = vunpack.c.l.b16 %v476
      %v493 = vunpack.c.l.b16 %v477
      %v494 = vunpack.c.l.b16 %v478
      %v495 = vpack.c.b16 %v488, %v487
      %v496 = vpack.c.b16 %v490, %v489
      %v497 = vpack.c.b16 %v492, %v491
      %v498 = vpack.c.b16 %v494, %v493
      %vm503 = vcmask 523264
      %v505 = vsel %vm503, %v470, 0
      %507 = vmatprep.subr.bf16.mxu0 0
      %508 = vmatpush1.bf16.msra.mxu0 %v495
      %509 = vmatprep.subr.bf16.mxu0 0
      %510 = vmatpush1.bf16.msra.mxu0 %v496
      %511 = vmatprep.subr.bf16.mxu0 0
      %512 = vmatpush1.bf16.msra.mxu0 %v497
      %513 = vmatprep.subr.bf16.mxu0 0
      %514 = vmatpush1.bf16.msra.mxu0 %v498
      %515 = vmatprep.subr.bf16.mxu0 0
      %516 = vmatpush1.bf16.msra.mxu0 0
      %517 = vmatprep.subr.bf16.mxu0 0
      %518 = vmatpush1.bf16.msra.mxu0 0
      %519 = vmatprep.subr.bf16.mxu0 0
      %520 = vmatpush1.bf16.msra.mxu0 0
      %521 = vmatprep.subr.bf16.mxu0 0
      %522 = vmatpush1.bf16.msra.mxu0 0
      %523 = vmatprep.subr.bf16.mxu0 0
      %524 = vmatpush1.bf16.msra.mxu0 0
      %525 = vmatprep.subr.bf16.mxu0 0
      %526 = vmatpush1.bf16.msra.mxu0 0
      %527 = vmatprep.subr.bf16.mxu0 0
      %528 = vmatpush1.bf16.msra.mxu0 0
      %529 = vmatprep.subr.bf16.mxu0 0
      %530 = vmatpush1.bf16.msra.mxu0 0
      %531 = vmatprep.subr.bf16.mxu0 0
      %532 = vmatpush1.bf16.msra.mxu0 0
      %533 = vmatprep.subr.bf16.mxu0 0
      %534 = vmatpush1.bf16.msra.mxu0 0
      %535 = vmatprep.subr.bf16.mxu0 0
      %536 = vmatpush1.bf16.msra.mxu0 0
      %537 = vmatprep.subr.bf16.mxu0 0
      %538 = vmatpush1.bf16.msra.mxu0 0
      %539 = vmatprep.mubr.bf16.mxu0 0
      %540 = vmatmul.mubr.bf16.gmra.mrb[0].mxu0 %v505
      %v541 = vpop.f32.mrb[0].mxu0
      %v542 = vadd.f32 0.0, %v541
      %v543 = vpop.f32.mrb[0].mxu0
      %v544 = vpop.f32.mrb[0].mxu0
      %v545 = vadd.f32 0.0, %v544
      %v546 = vpop.f32.mrb[0].mxu0
      %547 = vdwg.mxu0
      %s548 = scalar_lea.vmem %s2, 32
      %v549 = vld [vmem:[%s548] sm:$0xf]
      %v550 = vld [vmem:[%s548 + $0x4] sm:$0xf]
      %v551 = vld [vmem:[%s548 + $0x8] sm:$0xf]
      %v552 = vld [vmem:[%s548 + $0xc] sm:$0xf]
      %v553 = vld [vmem:[%s548 + $0x10] sm:$0xf]
      %v554 = vld [vmem:[%s548 + $0x14] sm:$0xf]
      %v555 = vld [vmem:[%s548 + $0x18] sm:$0xf]
      %v556 = vld [vmem:[%s548 + $0x1c] sm:$0xf]
      %v565 = vunpack.c.l.b16 %v549
      %v566 = vunpack.c.l.b16 %v550
      %v567 = vunpack.c.l.b16 %v551
      %v568 = vunpack.c.l.b16 %v552
      %v569 = vunpack.c.l.b16 %v553
      %v570 = vunpack.c.l.b16 %v554
      %v571 = vunpack.c.l.b16 %v555
      %v572 = vunpack.c.l.b16 %v556
      %v573 = vpack.c.b16 %v566, %v565
      %v574 = vpack.c.b16 %v568, %v567
      %v575 = vpack.c.b16 %v570, %v569
      %v576 = vpack.c.b16 %v572, %v571
      %581 = vmatprep.subr.bf16.mxu0 0
      %582 = vmatpush1.bf16.msra.mxu0 %v573
      %583 = vmatprep.subr.bf16.mxu0 0
      %584 = vmatpush1.bf16.msra.mxu0 %v574
      %585 = vmatprep.subr.bf16.mxu0 0
      %586 = vmatpush1.bf16.msra.mxu0 %v575
      %587 = vmatprep.subr.bf16.mxu0 0
      %588 = vmatpush1.bf16.msra.mxu0 %v576
      %589 = vmatprep.subr.bf16.mxu0 0
      %590 = vmatpush1.bf16.msra.mxu0 0
      %591 = vmatprep.subr.bf16.mxu0 0
      %592 = vmatpush1.bf16.msra.mxu0 0
      %593 = vmatprep.subr.bf16.mxu0 0
      %594 = vmatpush1.bf16.msra.mxu0 0
      %595 = vmatprep.subr.bf16.mxu0 0
      %596 = vmatpush1.bf16.msra.mxu0 0
      %597 = vmatprep.subr.bf16.mxu0 0
      %598 = vmatpush1.bf16.msra.mxu0 0
      %599 = vmatprep.subr.bf16.mxu0 0
      %600 = vmatpush1.bf16.msra.mxu0 0
      %601 = vmatprep.subr.bf16.mxu0 0
      %602 = vmatpush1.bf16.msra.mxu0 0
      %603 = vmatprep.subr.bf16.mxu0 0
      %604 = vmatpush1.bf16.msra.mxu0 0
      %605 = vmatprep.subr.bf16.mxu0 0
      %606 = vmatpush1.bf16.msra.mxu0 0
      %607 = vmatprep.subr.bf16.mxu0 0
      %608 = vmatpush1.bf16.msra.mxu0 0
      %609 = vmatprep.subr.bf16.mxu0 0
      %610 = vmatpush1.bf16.msra.mxu0 0
      %611 = vmatprep.subr.bf16.mxu0 0
      %612 = vmatpush1.bf16.msra.mxu0 0
      %613 = vmatprep.mubr.bf16.mxu0 0
      %614 = vmatmul.mubr.bf16.gmra.mrb[0].mxu0 %v505
      %v615 = vpop.f32.mrb[0].mxu0
      %v616 = vadd.f32 0.0, %v615
      %v617 = vpop.f32.mrb[0].mxu0
      %v618 = vpop.f32.mrb[0].mxu0
      %v619 = vadd.f32 0.0, %v618
      %v620 = vpop.f32.mrb[0].mxu0
      %621 = vdwg.mxu0
      %s622 = scalar_lea.vmem %s2, 64
      %v623 = vld [vmem:[%s622] sm:$0xf]
      %v624 = vld [vmem:[%s622 + $0x4] sm:$0xf]
      %v625 = vld [vmem:[%s622 + $0x8] sm:$0xf]
      %v626 = vld [vmem:[%s622 + $0xc] sm:$0xf]
      %v627 = vld [vmem:[%s622 + $0x10] sm:$0xf]
      %v628 = vld [vmem:[%s622 + $0x14] sm:$0xf]
      %v629 = vld [vmem:[%s622 + $0x18] sm:$0xf]
      %v630 = vld [vmem:[%s622 + $0x1c] sm:$0xf]
      %v639 = vunpack.c.l.b16 %v623
      %v640 = vunpack.c.l.b16 %v624
      %v641 = vunpack.c.l.b16 %v625
      %v642 = vunpack.c.l.b16 %v626
      %v643 = vunpack.c.l.b16 %v627
      %v644 = vunpack.c.l.b16 %v628
      %v645 = vunpack.c.l.b16 %v629
      %v646 = vunpack.c.l.b16 %v630
      %v647 = vpack.c.b16 %v640, %v639
      %v648 = vpack.c.b16 %v642, %v641
      %v649 = vpack.c.b16 %v644, %v643
      %v650 = vpack.c.b16 %v646, %v645
      %655 = vmatprep.subr.bf16.mxu0 0
      %656 = vmatpush1.bf16.msra.mxu0 %v647
      %657 = vmatprep.subr.bf16.mxu0 0
      %658 = vmatpush1.bf16.msra.mxu0 %v648
      %659 = vmatprep.subr.bf16.mxu0 0
      %660 = vmatpush1.bf16.msra.mxu0 %v649
      %661 = vmatprep.subr.bf16.mxu0 0
      %662 = vmatpush1.bf16.msra.mxu0 %v650
      %663 = vmatprep.subr.bf16.mxu0 0
      %664 = vmatpush1.bf16.msra.mxu0 0
      %665 = vmatprep.subr.bf16.mxu0 0
      %666 = vmatpush1.bf16.msra.mxu0 0
      %667 = vmatprep.subr.bf16.mxu0 0
      %668 = vmatpush1.bf16.msra.mxu0 0
      %669 = vmatprep.subr.bf16.mxu0 0
      %670 = vmatpush1.bf16.msra.mxu0 0
      %671 = vmatprep.subr.bf16.mxu0 0
      %672 = vmatpush1.bf16.msra.mxu0 0
      %673 = vmatprep.subr.bf16.mxu0 0
      %674 = vmatpush1.bf16.msra.mxu0 0
      %675 = vmatprep.subr.bf16.mxu0 0
      %676 = vmatpush1.bf16.msra.mxu0 0
      %677 = vmatprep.subr.bf16.mxu0 0
      %678 = vmatpush1.bf16.msra.mxu0 0
      %679 = vmatprep.subr.bf16.mxu0 0
      %680 = vmatpush1.bf16.msra.mxu0 0
      %681 = vmatprep.subr.bf16.mxu0 0
      %682 = vmatpush1.bf16.msra.mxu0 0
      %683 = vmatprep.subr.bf16.mxu0 0
      %684 = vmatpush1.bf16.msra.mxu0 0
      %685 = vmatprep.subr.bf16.mxu0 0
      %686 = vmatpush1.bf16.msra.mxu0 0
      %687 = vmatprep.mubr.bf16.mxu0 0
      %688 = vmatmul.mubr.bf16.gmra.mrb[0].mxu0 %v505
      %v689 = vpop.f32.mrb[0].mxu0
      %v690 = vadd.f32 0.0, %v689
      %v691 = vpop.f32.mrb[0].mxu0
      %v692 = vpop.f32.mrb[0].mxu0
      %v693 = vadd.f32 0.0, %v692
      %v694 = vpop.f32.mrb[0].mxu0
      %695 = vdwg.mxu0
      %vm698 = vcmask 1046528
      %v699 = vrot.slane %v616, 1
      %v700 = vrot.slane %v619, 1
      %v701 = vsel %vm698, %v699, %v700
      %v704 = vadd.f32 %v542, %v701
      %v705 = vadd.f32 %v545, %v700
      %vm708 = vcmask 1045504
      %v709 = vrot.slane %v690, 2
      %v710 = vrot.slane %v693, 2
      %v711 = vsel %vm708, %v709, %v710
      %v714 = vadd.f32 %v704, %v711
      %v715 = vadd.f32 %v705, %v710
      %v716 = vld [vmem:[%s5] sm:$0x1]
      %v718 = vlaneseq
      %v719 = vshrl.u32 %v718, 7
      %v720 = vsub.s32 0, %v719
      %v721 = vrot.slane %v716, %v720
      %v723 = vadd.f32 %v714, %v721
      %v724 = vadd.f32 %v715, %v721
      %v725 = vmax.f32 %v723, 0.0
      %v726 = vmax.f32 %v724, 0.0
      %v727 = vpack.c.bf16 %v726, %v725
      %v728 = vld [vmem:[%s3] sm:$0xff]
      %v729 = vld [vmem:[%s3 + $0x8] sm:$0xff]
      %v730 = vld [vmem:[%s3 + $0x10] sm:$0xff]
      %v731 = vld [vmem:[%s3 + $0x18] sm:$0xff]
      %v732 = vld [vmem:[%s3 + $0x20] sm:$0xff]
      %v733 = vld [vmem:[%s3 + $0x28] sm:$0xff]
      %v734 = vld [vmem:[%s3 + $0x30] sm:$0xff]
      %v735 = vld [vmem:[%s3 + $0x38] sm:$0xff]
      %v736 = vld [vmem:[%s6] sm:$0x3]
      %v738 = vlaneseq
      %v739 = vshrl.u32 %v738, 7
      %v740 = vsub.s32 0, %v739
      %v741 = vrot.slane %v736, %v740
      %v742 = vlaneseq
      %v743 = vshrl.u32 %v742, 7
      %v744 = vsub.s32 1, %v743
      %v745 = vrot.slane %v736, %v744
      %v756 = vunpack.c.l.b16 %v728
      %v757 = vunpack.c.h.b16 %v728
      %v758 = vunpack.c.l.b16 %v729
      %v759 = vunpack.c.h.b16 %v729
      %v760 = vunpack.c.l.b16 %v730
      %v761 = vunpack.c.h.b16 %v730
      %v762 = vunpack.c.l.b16 %v731
      %v763 = vunpack.c.h.b16 %v731
      %v764 = vunpack.c.l.b16 %v732
      %v765 = vunpack.c.h.b16 %v732
      %v766 = vunpack.c.l.b16 %v733
      %v767 = vunpack.c.h.b16 %v733
      %v768 = vunpack.c.l.b16 %v734
      %v769 = vunpack.c.h.b16 %v734
      %v770 = vunpack.c.l.b16 %v735
      %v771 = vunpack.c.h.b16 %v735
      %v772 = vpack.c.b16 %v758, %v756
      %v773 = vpack.c.b16 %v759, %v757
      %v774 = vpack.c.b16 %v762, %v760
      %v775 = vpack.c.b16 %v763, %v761
      %v776 = vpack.c.b16 %v766, %v764
      %v777 = vpack.c.b16 %v767, %v765
      %v778 = vpack.c.b16 %v770, %v768
      %v779 = vpack.c.b16 %v771, %v769
      %v789 = vsel %vm503, %v727, 0
      %791 = vmatprep.subr.bf16.mxu0 %v773
      %792 = vmatpush1.bf16.msra.mxu0 %v772
      %793 = vmatprep.subr.bf16.mxu0 %v775
      %794 = vmatpush1.bf16.msra.mxu0 %v774
      %795 = vmatprep.subr.bf16.mxu0 %v777
      %796 = vmatpush1.bf16.msra.mxu0 %v776
      %797 = vmatprep.subr.bf16.mxu0 %v779
      %798 = vmatpush1.bf16.msra.mxu0 %v778
      %799 = vmatprep.subr.bf16.mxu0 0
      %800 = vmatpush1.bf16.msra.mxu0 0
      %801 = vmatprep.subr.bf16.mxu0 0
      %802 = vmatpush1.bf16.msra.mxu0 0
      %803 = vmatprep.subr.bf16.mxu0 0
      %804 = vmatpush1.bf16.msra.mxu0 0
      %805 = vmatprep.subr.bf16.mxu0 0
      %806 = vmatpush1.bf16.msra.mxu0 0
      %807 = vmatprep.subr.bf16.mxu0 0
      %808 = vmatpush1.bf16.msra.mxu0 0
      %809 = vmatprep.subr.bf16.mxu0 0
      %810 = vmatpush1.bf16.msra.mxu0 0
      %811 = vmatprep.subr.bf16.mxu0 0
      %812 = vmatpush1.bf16.msra.mxu0 0
      %813 = vmatprep.subr.bf16.mxu0 0
      %814 = vmatpush1.bf16.msra.mxu0 0
      %815 = vmatprep.subr.bf16.mxu0 0
      %816 = vmatpush1.bf16.msra.mxu0 0
      %817 = vmatprep.subr.bf16.mxu0 0
      %818 = vmatpush1.bf16.msra.mxu0 0
      %819 = vmatprep.subr.bf16.mxu0 0
      %820 = vmatpush1.bf16.msra.mxu0 0
      %821 = vmatprep.subr.bf16.mxu0 0
      %822 = vmatpush1.bf16.msra.mxu0 0
      %823 = vmatprep.mubr.bf16.mxu0 0
      %824 = vmatmul.mubr.bf16.gmra.mrb[0].mxu0 %v789
      %v825 = vpop.f32.mrb[0].mxu0
      %v826 = vadd.f32 %v741, %v825
      %v827 = vpop.f32.mrb[0].mxu0
      %v828 = vadd.f32 %v745, %v827
      %v829 = vpop.f32.mrb[0].mxu0
      %v830 = vadd.f32 %v741, %v829
      %v831 = vpop.f32.mrb[0].mxu0
      %v832 = vadd.f32 %v745, %v831
      %833 = vdwg.mxu0
      %v834 = vunpack.c.l.bf16 %v280
      %v835 = vunpack.c.h.bf16 %v280
      %v836 = vunpack.c.l.bf16 %v281
      %v837 = vunpack.c.h.bf16 %v281
      %v842 = vrot.slane %v834, 1
      %v843 = vrot.slane %v836, 1
      %v844 = vsel %vm698, %v842, %v843
      %v845 = vrot.slane %v835, 1
      %v846 = vrot.slane %v837, 1
      %v847 = vsel %vm698, %v845, %v846
      %v852 = vadd.f32 %v826, %v844
      %v853 = vadd.f32 %v828, %v847
      %v854 = vadd.f32 %v830, %v843
      %v855 = vadd.f32 %v832, %v846
      %v856 = vmax.f32 %v852, 0.0
      %v857 = vmax.f32 %v853, 0.0
      %v858 = vmax.f32 %v854, 0.0
      %v859 = vmax.f32 %v855, 0.0
      %860 = vst [vmem:[%s278] sm:$0xff] %v856
      %861 = vst [vmem:[%s278 + $0x8] sm:$0xff] %v857
      %862 = vst [vmem:[%s278 + $0x10] sm:$0x3f] %v858
      %863 = vst [vmem:[%s278 + $0x18] sm:$0x3f] %v859
      %p864 = scmp.lt.s32.totalorder %s18, 1
      %s865 = scalar_select %p864, %s18, 1
      %s866 = smul.addr %s865, 4
      %s867 = smul.addr %s866, 8
      %s868 = scalar_lea.vmem %s7, %s867
      // Predicated region
      $region49: #{tpu_custom_call.1} parent=47 // pred_check
        %p869 = pneg %p188
      $region50: #{tpu_custom_call.1} parent=47 // pred_check_branch
        %871 = sbr.rel (%p869) target = $region52
      $region51: #{tpu_custom_call.1} parent=47 // pred_region
        _
      $region52: #{tpu_custom_call.1} parent=47 // pred_fallthru
        _
    $region48: #{tpu_custom_call.1} parent=5 // pred_fallthru
      _
    %p872 = scmp.le.s32.totalorder 2, %s13
    // Predicated region
    $region53: #{tpu_custom_call.1} parent=5 // pred_check
      %p873 = pneg %p872
    $region54: #{tpu_custom_call.1} parent=5 // pred_check_branch
      %875 = sbr.rel (%p873) target = $region56
    $region55: #{tpu_custom_call.1} parent=5 // pred_region
      %s876 = ssub.s32 %s13, 2
      // Predicated region
      $region57: #{tpu_custom_call.1} parent=55 // pred_check
        %p877 = pneg %p194
      $region58: #{tpu_custom_call.1} parent=55 // pred_check_branch
        %879 = sbr.rel (%p877) target = $region60
      $region59: #{tpu_custom_call.1} parent=55 // pred_region
        %p880 = scmp.lt.s32.totalorder %s19, 1
        %s881 = scalar_select %p880, %s19, 1
        %s882 = smul.addr %s881, 4
        %s883 = smul.addr %s882, 8
        %s884 = scalar_lea.vmem %s7, %s883
      $region60: #{tpu_custom_call.1} parent=55 // pred_fallthru
        _
    $region56: #{tpu_custom_call.1} parent=5 // pred_fallthru
      _
  $region6: #{tpu_custom_call.1} parent=0 // loop_footer
    %s17 = sadd.s32 1, %s13
  $region7: #{tpu_custom_call.1} parent=0 // loop_footer_branch
    %12 = sbr.rel target = $region3
  $region8: #{tpu_custom_call.1} parent=0 // loop_exit
    _

</llo_original>
